<compile_context>
chip_gen: v5e
topology: v5e:2x2
jax: 0.10.0
libtpu: 0.0.40
codegen_flags: <defaults>
</compile_context>

<pallas_src>
from functools import partial

import jax
import jax.numpy as jnp
from jax.experimental import pallas as pl
from jax.experimental.pallas import tpu as pltpu

IN_FEATURES = 84
OUT_FEATURES = 10
LANES = 128            # pad output features to a full lane width
MAX_TM = 4096          # 4096*84*4B ≈ 1.3 MiB per x buffer; ~3.3 MiB total
                       # double-buffered (x + out) — safe on v7x's 32 MiB.


def _linear_kernel(x_ref, w_ref, b_ref, o_ref):
    # x_ref: (TM, 84)  w_ref: (84, 128)  b_ref: (1, 128)  o_ref: (TM, 128)
    acc = jnp.dot(x_ref[...], w_ref[...], preferred_element_type=jnp.float32)
    o_ref[...] = (acc + b_ref[...]).astype(o_ref.dtype)


def prepare_f5_params(weight, bias):
    """One-time setup: transpose PyTorch-layout weight and pad to 128 lanes.

    weight: (10, 84) f32 (PyTorch nn.Linear layout), bias: (10,) f32.
    Returns w_pad: (84, 128) f32, b_pad: (1, 128) f32.
    """
    w_t = weight.T.astype(jnp.float32)                              # (84, 10)
    w_pad = jnp.zeros((IN_FEATURES, LANES), jnp.float32)
    w_pad = w_pad.at[:, :OUT_FEATURES].set(w_t)
    b_pad = jnp.zeros((1, LANES), jnp.float32)
    b_pad = b_pad.at[:, :OUT_FEATURES].set(bias.astype(jnp.float32))
    return w_pad, b_pad


@jax.jit
def f5_forward(x, w_pad, b_pad):
    """x: (B, 84) f32; w_pad: (84, 128); b_pad: (1, 128). Returns (B, 10) f32."""
    B = x.shape[0]

    # Tile size over B: multiple of 8, capped for VMEM headroom on v7x.
    tm = min(MAX_TM, ((B + 7) // 8) * 8)
    b_pad_rows = ((B + tm - 1) // tm) * tm
    if b_pad_rows != B:
        x = jnp.pad(x, ((0, b_pad_rows - B), (0, 0)))

    out = pl.pallas_call(
        _linear_kernel,
        out_shape=jax.ShapeDtypeStruct((b_pad_rows, LANES), jnp.float32),
        grid=(b_pad_rows // tm,),
        in_specs=[
            pl.BlockSpec((tm, IN_FEATURES), lambda i: (i, 0)),   # stream x
            pl.BlockSpec((IN_FEATURES, LANES), lambda i: (0, 0)),  # resident W
            pl.BlockSpec((1, LANES), lambda i: (0, 0)),            # resident b
        ],
        out_specs=pl.BlockSpec((tm, LANES), lambda i: (i, 0)),
        compiler_params=pltpu.CompilerParams(
            dimension_semantics=("parallel",)),
    )(x, w_pad, b_pad)

    # Strip batch padding and the lane padding (only first 10 outputs are real).
    return out[:B, :OUT_FEATURES]


if __name__ == "__main__":
    key = jax.random.PRNGKey(0)
    kx, kw, kb = jax.random.split(key, 3)

    B = 8
    # Deterministic parameter init (mimics PyTorch Linear uniform bound 1/sqrt(fan_in)).
    bound = 1.0 / (IN_FEATURES ** 0.5)
    weight = jax.random.uniform(kw, (OUT_FEATURES, IN_FEATURES), jnp.float32,
                                -bound, bound)
    bias = jax.random.uniform(kb, (OUT_FEATURES,), jnp.float32, -bound, bound)
    x = jax.random.normal(kx, (B, IN_FEATURES), jnp.float32)

    # One-time parameter prep (transpose + lane padding), then the kernel call.
    w_pad, b_pad = prepare_f5_params(weight, bias)
    out = f5_forward(x, w_pad, b_pad)
    out = jax.block_until_ready(out)

    # Reference check against plain JAX (same semantics as PyTorch Linear).
    ref = x @ weight.T + bias
    assert out.shape == (B, OUT_FEATURES), f"bad shape {out.shape}"
    assert jnp.allclose(out, ref, atol=1e-5, rtol=1e-5), "mismatch vs reference"

    print("KERNEL_OK")
</pallas_src>

<mosaic_0001>
module attributes {stable_mosaic.version = 11 : i64} {
  func.func @_linear_kernel(%arg0: i32, %arg1: memref<8x84xf32, #tpu.memory_space<vmem>>, %arg2: memref<84x128xf32, #tpu.memory_space<vmem>>, %arg3: memref<1x128xf32, #tpu.memory_space<vmem>>, %arg4: memref<8x128xf32, #tpu.memory_space<vmem>>) attributes {dimension_semantics = [#tpu.dimension_semantics<parallel>], iteration_bounds = array<i64: 1>, scalar_prefetch = 0 : i64, scratch_operands = 0 : i64, tpu.core_type = #tpu.core_type<tc>, window_params = [{transform_indices = @transform_0, window_bounds = array<i64: 8, 84>}, {pipeline_mode = #tpu.pipeline_mode<synchronous>, transform_indices = @transform_1, window_bounds = array<i64: 84, 128>}, {pipeline_mode = #tpu.pipeline_mode<synchronous>, transform_indices = @transform_2, window_bounds = array<i64: 1, 128>}, {transform_indices = @transform_3, window_bounds = array<i64: 8, 128>}]} {
    %c0 = arith.constant 0 : index
    %c0_0 = arith.constant 0 : index
    %0 = vector.load %arg1[%c0, %c0_0] : memref<8x84xf32, #tpu.memory_space<vmem>>, vector<8x84xf32>
    %c0_1 = arith.constant 0 : index
    %c0_2 = arith.constant 0 : index
    %1 = vector.load %arg2[%c0_1, %c0_2] : memref<84x128xf32, #tpu.memory_space<vmem>>, vector<84x128xf32>
    %cst = arith.constant dense<0.000000e+00> : vector<8x128xf32>
    %2 = tpu.matmul %0, %1, %cst {dimension_numbers = #tpu.dot_dimension_numbers<[1], [0], [0], [1], [0, 0, 1, 1], [], []>} : vector<8x84xf32>, vector<84x128xf32>, vector<8x128xf32> -> vector<8x128xf32>
    %c0_3 = arith.constant 0 : index
    %c0_4 = arith.constant 0 : index
    %3 = vector.load %arg3[%c0_3, %c0_4] : memref<1x128xf32, #tpu.memory_space<vmem>>, vector<1x128xf32>
    %4 = vector.broadcast %3 : vector<1x128xf32> to vector<8x128xf32>
    %5 = arith.addf %2, %4 : vector<8x128xf32>
    %c0_5 = arith.constant 0 : index
    %c0_6 = arith.constant 0 : index
    %6 = vector.load %arg4[%c0_5, %c0_6] : memref<8x128xf32, #tpu.memory_space<vmem>>, vector<8x128xf32>
    tpu.vector_store %arg4[%c0_5, %c0_6], %5 {strides = array<i32>} : memref<8x128xf32, #tpu.memory_space<vmem>>, vector<8x128xf32>,
    return
  }
  func.func @transform_0(%arg0: i32) -> (i32, i32) {
    %c0_i32 = arith.constant 0 : i32
    %c0_i32_0 = arith.constant 0 : i32
    return %arg0, %c0_i32 : i32, i32
  }
  func.func @transform_1(%arg0: i32) -> (i32, i32) {
    %c0_i32 = arith.constant 0 : i32
    %c0_i32_0 = arith.constant 0 : i32
    %c0_i32_1 = arith.constant 0 : i32
    return %c0_i32, %c0_i32_0 : i32, i32
  }
  func.func @transform_2(%arg0: i32) -> (i32, i32) {
    %c0_i32 = arith.constant 0 : i32
    %c0_i32_0 = arith.constant 0 : i32
    %c0_i32_1 = arith.constant 0 : i32
    return %c0_i32, %c0_i32_0 : i32, i32
  }
  func.func @transform_3(%arg0: i32) -> (i32, i32) {
    %c0_i32 = arith.constant 0 : i32
    %c0_i32_0 = arith.constant 0 : i32
    return %arg0, %c0_i32 : i32, i32
  }
}

</mosaic_0001>

<llo_original>
// kernel: f5_forward.1
$region0: #{f5_forward.1}
  #allocation0 [shape = 'u32[]', space=smem, size = 0x4, offset = 0x4, fixed_abs, tag = 'smem constant byte address 0x4 - core index']
  #allocation1 [shape = 'u32[72,128]{1,0:T(1,128)}', space=vmem, size = 0x9000, scoped, tag = 'internal scratch']
  %s0 = inlined_call_operand.hbm [shape: f32[8,84], index: 0, kind: input, shape index: {}]
  %s1 = inlined_call_operand.hbm [shape: f32[84,128], index: 1, kind: input, shape index: {}]
  %s2 = inlined_call_operand.vmem [shape: f32[1,128], index: 2, kind: input, shape index: {}]
  %s3 = inlined_call_operand.hbm [shape: f32[8,128], index: 3, kind: output, shape index: {}]
  %s4 = sld [smem:[#allocation0]]
  $region30: #{f5_forward.1} parent=0
    _
  %s6 = ssub.s32 1, %s4
  %s7 = scalar_select 0, %s6, %s4
  $region1: #{f5_forward.1} parent=0
    #allocation2 [shape = 'u8[4096]{0}', space=vmem, size = 0x1000, scoped, tag = 'input window, operand 0, single buffered']
    #allocation3 [shape = 's32[1]{0}', space=sflag, size = 0x4, scoped, tag = 'scoped memory for f5_forward.1']
    #allocation4 [shape = 's32[1]{0}', space=sflag, size = 0x4, scoped, tag = 'scoped memory for f5_forward.1']
    #allocation5 [shape = 'u8[45056]{0}', space=vmem, size = 0xb000, scoped, tag = 'input window, operand 1, single buffered']
    #allocation6 [shape = 's32[1]{0}', space=sflag, size = 0x4, scoped, tag = 'scoped memory for f5_forward.1']
    #allocation7 [shape = 'u8[4096]{0}', space=vmem, size = 0x1000, scoped, tag = 'output window, operand 0, single buffered']
    %8 = vsyncpa [#allocation3], 0
    %9 = vsyncpa [#allocation6], 0
    %10 = vsyncpa [#allocation4], 0
    // Predicated region
    $region2: #{f5_forward.1} parent=1 // pred_check
      _
    $region3: #{f5_forward.1} parent=1 // pred_check_branch
      %12 = sbr.rel (0) target = $region5
    $region4: #{f5_forward.1} parent=1 // pred_region
      %14 = vsyncadd [#allocation3], 0
      %s16 = sshll.u32 %s0, 4
      %s17 = int_to_ptr.hbm [resolvable:$true] %s16
      %s18 = sshll.u32 [#allocation2], 4
      %s19 = int_to_ptr.vmem [resolvable:$true] %s18
      %21 = dma.hbm_to_vmem [thread:$0]  %s17, 128, %s19, [#allocation3]
    $region5: #{f5_forward.1} parent=1 // pred_fallthru
      _
    // Predicated region
    $region6: #{f5_forward.1} parent=1 // pred_check
      _
    $region7: #{f5_forward.1} parent=1 // pred_check_branch
      %23 = sbr.rel (0) target = $region9
    $region8: #{f5_forward.1} parent=1 // pred_region
      %25 = vsyncadd [#allocation6], 0
      %s26 = sshll.u32 %s1, 4
      %s27 = int_to_ptr.hbm [resolvable:$true] %s26
      %s28 = sshll.u32 [#allocation5], 4
      %s29 = int_to_ptr.vmem [resolvable:$true] %s28
      %34 = dma.hbm_to_vmem [thread:$0]  %s27, 1408, %s29, [#allocation6], 128, 128, 8
    $region9: #{f5_forward.1} parent=1 // pred_fallthru
      _
    // Predicated region
    $region10: #{f5_forward.1} parent=1 // pred_check
      _
    $region11: #{f5_forward.1} parent=1 // pred_check_branch
      %36 = sbr.rel (0) target = $region13
    $region12: #{f5_forward.1} parent=1 // pred_region
      _
    $region13: #{f5_forward.1} parent=1 // pred_fallthru
      _
    // Predicated region
    $region14: #{f5_forward.1} parent=1 // pred_check
      _
    $region15: #{f5_forward.1} parent=1 // pred_check_branch
      %38 = sbr.rel (0) target = $region17
    $region16: #{f5_forward.1} parent=1 // pred_region
      %40 = dma.done [#allocation3], 128
    $region17: #{f5_forward.1} parent=1 // pred_fallthru
      _
    // Predicated region
    $region18: #{f5_forward.1} parent=1 // pred_check
      _
    $region19: #{f5_forward.1} parent=1 // pred_check_branch
      %42 = sbr.rel (0) target = $region21
    $region20: #{f5_forward.1} parent=1 // pred_region
      %44 = dma.done [#allocation6], 1408
    $region21: #{f5_forward.1} parent=1 // pred_fallthru
      _
    %v45 = vld [vmem:[#allocation2] sm:$0xff]
    %v46 = vld [vmem:[#allocation5] sm:$0xff]
    %v47 = vld [vmem:[#allocation5 + $0x8] sm:$0xff]
    %v48 = vld [vmem:[#allocation5 + $0x10] sm:$0xff]
    %v49 = vld [vmem:[#allocation5 + $0x18] sm:$0xff]
    %v50 = vld [vmem:[#allocation5 + $0x20] sm:$0xff]
    %v51 = vld [vmem:[#allocation5 + $0x28] sm:$0xff]
    %v52 = vld [vmem:[#allocation5 + $0x30] sm:$0xff]
    %v53 = vld [vmem:[#allocation5 + $0x38] sm:$0xff]
    %v54 = vld [vmem:[#allocation5 + $0x40] sm:$0xff]
    %v55 = vld [vmem:[#allocation5 + $0x48] sm:$0xff]
    %v56 = vld [vmem:[#allocation5 + $0x50] sm:$0xf]
    %v57 = vld [vmem:[%s2] sm:$0x1]
    %v59 = vperm.slane %v57, 0
    %vm61 = vcmask 687104
    %v63 = vsel %vm61, %v45, 0
    %vm65 = vcmask 1043456
    %v67 = vsel %vm65, %v56, 0
    %69 = vmatpush.msra.mxu0 0.0
    %70 = vmatpush.msra.mxu0 0.0
    %71 = vmatpush.msra.mxu0 0.0
    %72 = vmatpush.msra.mxu0 0.0
    %73 = vmatpush.msra.mxu0 0.0
    %74 = vmatpush.msra.mxu0 %v67
    %75 = vmatpush.msra.mxu0 %v55
    %76 = vmatpush.msra.mxu0 %v54
    %77 = vmatpush.msra.mxu0 %v53
    %78 = vmatpush.msra.mxu0 %v52
    %79 = vmatpush.msra.mxu0 %v51
    %80 = vmatpush.msra.mxu0 %v50
    %81 = vmatpush.msra.mxu0 %v49
    %82 = vmatpush.msra.mxu0 %v48
    %83 = vmatpush.msra.mxu0 %v47
    %84 = vmatpush.msra.mxu0 %v46
    %85 = vmatmul.f32.gmra.mxu0 %v63
    %v86 = vpop.f32.mrf.mxu0
    %v87 = vadd.f32 %v59, %v86
    %88 = vdwg.mxu0
    %89 = vst [vmem:[#allocation7] sm:$0xff] %v87
    // Predicated region
    $region22: #{f5_forward.1} parent=1 // pred_check
      _
    $region23: #{f5_forward.1} parent=1 // pred_check_branch
      %91 = sbr.rel (0) target = $region25
    $region24: #{f5_forward.1} parent=1 // pred_region
      %93 = vsyncadd [#allocation4], 0
      %s95 = sshll.u32 [#allocation7], 4
      %s96 = int_to_ptr.vmem [resolvable:$true] %s95
      %s97 = sshll.u32 %s3, 4
      %s98 = int_to_ptr.hbm [resolvable:$true] %s97
      %100 = dma.vmem_to_hbm [thread:$0]  %s96, 128, %s98, [#allocation4]
    $region25: #{f5_forward.1} parent=1 // pred_fallthru
      _
    // Predicated region
    $region26: #{f5_forward.1} parent=1 // pred_check
      _
    $region27: #{f5_forward.1} parent=1 // pred_check_branch
      %102 = sbr.rel (0) target = $region29
    $region28: #{f5_forward.1} parent=1 // pred_region
      %104 = dma.done [#allocation4], 128
    $region29: #{f5_forward.1} parent=1 // pred_fallthru
      _
    %105 = vsyncpa [#allocation3], 1
    %106 = vsyncpa [#allocation6], 1
    %107 = vsyncpa [#allocation4], 1

</llo_original>
